<compile_context>
chip_gen: v5e
topology: v5e:2x2
jax: 0.10.0
libtpu: 0.0.40
codegen_flags: <defaults>
</compile_context>

<pallas_src>
import functools

import jax
import jax.numpy as jnp
from jax import lax
from jax.experimental import pallas as pl
from jax.experimental.pallas import tpu as pltpu


# ---------------------------------------------------------------------------
# Kernels
# ---------------------------------------------------------------------------
def _ce_kernel_single(logits_ref, target_ref, out_ref, *, n_total, tile_n):
    """Whole class axis in one tile: single-pass, no scratch, no phases."""
    i = pl.program_id(0)
    logits = logits_ref[...].astype(jnp.float32)          # (tile_n, C)
    tgt = target_ref[...]                                  # (tile_n, 1) int32
    tn, tc = logits.shape

    m = jnp.max(logits, axis=-1, keepdims=True)
    l = jnp.sum(jnp.exp(logits - m), axis=-1, keepdims=True)

    col = lax.broadcasted_iota(jnp.int32, (tn, tc), 1)
    t = jnp.sum(jnp.where(col == tgt, logits, 0.0), axis=-1, keepdims=True)

    per_row = m + jnp.log(l) - t                           # -log p[target]
    if (n_total % tile_n) != 0:                            # static gate
        row = lax.broadcasted_iota(jnp.int32, (tn, 1), 0) + i * tile_n
        per_row = jnp.where(row < n_total, per_row, 0.0)
    out_ref[...] = per_row


def _ce_kernel_multi(logits_ref, target_ref, out_ref, m_sc, l_sc, t_sc,
                     *, n_total, c_total, tile_n, tile_c):
    """Online (flash-style) logsumexp over class tiles + fused target gather."""
    i = pl.program_id(0)           # batch-tile index (parallel)
    j = pl.program_id(1)           # class-tile index (arbitrary / reduction)
    last_j = pl.num_programs(1) - 1

    @pl.when(j == 0)
    def _init():
        m_sc[...] = jnp.full_like(m_sc, -jnp.inf)
        l_sc[...] = jnp.zeros_like(l_sc)
        t_sc[...] = jnp.zeros_like(t_sc)

    logits = logits_ref[...].astype(jnp.float32)           # (tile_n, tile_c)
    tgt = target_ref[...]                                   # (tile_n, 1) int32
    tn, tc = logits.shape
    col_local = lax.broadcasted_iota(jnp.int32, (tn, tc), 1)

    def _update(vals):
        m_prev = m_sc[...]
        m_new = jnp.maximum(m_prev, jnp.max(vals, axis=-1, keepdims=True))
        alpha = jnp.exp(m_prev - m_new)
        p_sum = jnp.sum(jnp.exp(vals - m_new), axis=-1, keepdims=True)
        l_sc[...] = alpha * l_sc[...] + p_sum
        m_sc[...] = m_new

    c_rem = c_total % tile_c       # static: valid columns in the last tile
    if c_rem != 0:
        # Interior tiles: raw logits (no masking ops on the hot path).
        @pl.when(j != last_j)
        def _interior():
            _update(logits)

        # Last class tile: mask padded columns to -inf (tile-local compare
        # against a static scalar — no global iota add).
        @pl.when(j == last_j)
        def _padded():
            _update(jnp.where(col_local < c_rem, logits, -jnp.inf))
    else:
        _update(logits)

    # Fused target gather: the target column lives in exactly one class tile;
    # padded columns can never match since tgt < c_total.  Tile-local compare
    # against the scalar-shifted target avoids a full-tile int32 add.
    tgt_local = tgt - j * tile_c
    t_sc[...] += jnp.sum(jnp.where(col_local == tgt_local, logits, 0.0),
                         axis=-1, keepdims=True)

    @pl.when(j == last_j)
    def _finalize():
        per_row = m_sc[...] + jnp.log(l_sc[...]) - t_sc[...]
        if (n_total % tile_n) != 0:                        # static gate
            row = lax.broadcasted_iota(jnp.int32, (tn, 1), 0) + i * tile_n
            per_row = jnp.where(row < n_total, per_row, 0.0)
        out_ref[...] = per_row


# ---------------------------------------------------------------------------
# Wrapper
# ---------------------------------------------------------------------------
def _vmem_budget_bytes(tile_n, tile_c, itemsize):
    """Explicit VMEM budget: 2x input block (double buffer) + ~1.5x block of
    f32 intermediates + lane-padded (tile_n, 1)->(tile_n, 128) buffers."""
    in_block = tile_n * tile_c * itemsize
    f32_tmp = tile_n * tile_c * 4
    lane_pad = 8 * tile_n * 128 * 4
    budget = 2 * in_block + (3 * f32_tmp) // 2 + lane_pad + (2 << 20)
    # Floor at the common 32 MiB default; cap at 48 MiB so v7x (64 MiB
    # physical VMEM) keeps headroom.  v5e/v6e (128 MiB) are comfortably fine.
    return min(max(budget, 32 << 20), 48 << 20)


def cross_entropy_loss(logits: jax.Array, target: jax.Array,
                       *, tile_n: int = 512, tile_c: int = 4096) -> jax.Array:
    """logits: (N, C) float (any dtype); target: (N,) int class labels.
    Returns scalar mean cross-entropy loss (nn.CrossEntropyLoss default)."""
    n, c = logits.shape
    # Clamp tiles to the array (full-dim blocks are always legal); larger
    # inputs use 8/128-aligned tiles with statically-gated in-kernel masking.
    tile_n = n if n <= tile_n else tile_n
    tile_c = c if c <= tile_c else tile_c

    target2d = target.astype(jnp.int32).reshape(n, 1)
    itemsize = jnp.dtype(logits.dtype).itemsize

    cost = pl.CostEstimate(
        flops=5 * n * c,
        transcendentals=n * c + n,
        bytes_accessed=n * c * itemsize + n * 4 + n * 4,
    )
    compiler_params = dict(
        vmem_limit_bytes=_vmem_budget_bytes(tile_n, tile_c, itemsize))

    n_tiles = pl.cdiv(n, tile_n)
    c_tiles = pl.cdiv(c, tile_c)

    if c_tiles == 1:
        # Single class tile: one-pass kernel, 1-D grid over batch tiles.
        kernel = functools.partial(_ce_kernel_single, n_total=n, tile_n=tile_n)
        per_row = pl.pallas_call(
            kernel,
            out_shape=jax.ShapeDtypeStruct((n, 1), jnp.float32),
            grid_spec=pltpu.PrefetchScalarGridSpec(
                num_scalar_prefetch=0,
                grid=(n_tiles,),
                in_specs=[
                    pl.BlockSpec((tile_n, tile_c), lambda i: (i, 0)),
                    pl.BlockSpec((tile_n, 1), lambda i: (i, 0)),
                ],
                out_specs=pl.BlockSpec((tile_n, 1), lambda i: (i, 0)),
            ),
            compiler_params=pltpu.CompilerParams(
                dimension_semantics=("parallel",), **compiler_params),
            cost_estimate=cost,
        )(logits, target2d)
    else:
        kernel = functools.partial(
            _ce_kernel_multi, n_total=n, c_total=c,
            tile_n=tile_n, tile_c=tile_c)
        per_row = pl.pallas_call(
            kernel,
            out_shape=jax.ShapeDtypeStruct((n, 1), jnp.float32),
            grid_spec=pltpu.PrefetchScalarGridSpec(
                num_scalar_prefetch=0,
                grid=(n_tiles, c_tiles),
                in_specs=[
                    pl.BlockSpec((tile_n, tile_c), lambda i, j: (i, j)),
                    pl.BlockSpec((tile_n, 1), lambda i, j: (i, 0)),
                ],
                out_specs=pl.BlockSpec((tile_n, 1), lambda i, j: (i, 0)),
                scratch_shapes=[
                    pltpu.VMEM((tile_n, 1), jnp.float32),   # running max
                    pltpu.VMEM((tile_n, 1), jnp.float32),   # running sum-exp
                    pltpu.VMEM((tile_n, 1), jnp.float32),   # target logit
                ],
            ),
            compiler_params=pltpu.CompilerParams(
                dimension_semantics=("parallel", "arbitrary"),
                **compiler_params),
            cost_estimate=cost,
        )(logits, target2d)

    # Padded rows were zeroed in-kernel; mean over the true batch size.
    return jnp.sum(per_row) / jnp.float32(n)


# ---------------------------------------------------------------------------
# Self-test
# ---------------------------------------------------------------------------
def _ref_loss(logits, target):
    logp = jax.nn.log_softmax(logits.astype(jnp.float32), axis=-1)
    return -jnp.mean(jnp.take_along_axis(logp, target[:, None], axis=-1))


if __name__ == "__main__":
    key = jax.random.PRNGKey(0)
    k1, k2, k3, k4, k5, k6 = jax.random.split(key, 6)

    # 1) Small f32 case (single class tile, whole batch in one tile).
    N, C = 8, 32
    logits = jax.random.normal(k1, (N, C), dtype=jnp.float32)
    target = jax.random.randint(k2, (N,), 0, C, dtype=jnp.int32)
    loss = cross_entropy_loss(logits, target)
    jax.block_until_ready(loss)
    ref = _ref_loss(logits, target)
    assert jnp.allclose(loss, ref, atol=1e-5, rtol=1e-5), (loss, ref)

    # 2) bf16 logits, multi class-tile path with padded N and padded C tiles.
    N2, C2 = 20, 200
    logits2 = jax.random.normal(k3, (N2, C2), dtype=jnp.bfloat16)
    target2 = jax.random.randint(k4, (N2,), 0, C2, dtype=jnp.int32)
    loss2 = cross_entropy_loss(logits2, target2, tile_n=8, tile_c=128)
    jax.block_until_ready(loss2)
    ref2 = _ref_loss(logits2, target2)
    assert jnp.allclose(loss2, ref2, atol=1e-4, rtol=1e-4), (loss2, ref2)

    # 3) f32, multi class-tile path with exact C tiling but padded N tiles.
    N3, C3 = 10, 256
    logits3 = jax.random.normal(k5, (N3, C3), dtype=jnp.float32)
    target3 = jax.random.randint(k6, (N3,), 0, C3, dtype=jnp.int32)
    loss3 = cross_entropy_loss(logits3, target3, tile_n=8, tile_c=128)
    jax.block_until_ready(loss3)
    ref3 = _ref_loss(logits3, target3)
    assert jnp.allclose(loss3, ref3, atol=1e-5, rtol=1e-5), (loss3, ref3)

    print("KERNEL_OK")
</pallas_src>

<mosaic_0001>
module attributes {stable_mosaic.version = 11 : i64} {
  func.func @_ce_kernel_single(%arg0: i32, %arg1: memref<8x32xf32, #tpu.memory_space<vmem>>, %arg2: memref<8x1xi32, #tpu.memory_space<vmem>>, %arg3: memref<8x1xf32, #tpu.memory_space<vmem>>) attributes {dimension_semantics = [#tpu.dimension_semantics<parallel>], iteration_bounds = array<i64: 1>, scalar_prefetch = 0 : i64, scratch_operands = 0 : i64, tpu.core_type = #tpu.core_type<tc>, window_params = [{transform_indices = @transform_0, window_bounds = array<i64: 8, 32>}, {transform_indices = @transform_1, window_bounds = array<i64: 8, 1>}, {transform_indices = @transform_2, window_bounds = array<i64: 8, 1>}]} {
    %c0 = arith.constant 0 : index
    %c0_0 = arith.constant 0 : index
    %0 = vector.load %arg1[%c0, %c0_0] : memref<8x32xf32, #tpu.memory_space<vmem>>, vector<8x32xf32>
    %c0_1 = arith.constant 0 : index
    %c0_2 = arith.constant 0 : index
    %1 = vector.load %arg2[%c0_1, %c0_2] : memref<8x1xi32, #tpu.memory_space<vmem>>, vector<8x1xi32>
    %cst = arith.constant dense<0xFF800000> : vector<8xf32>
    %2 = vector.multi_reduction <maximumf>, %0, %cst [1] : vector<8x32xf32> to vector<8xf32>
    %3 = vector.shape_cast %2 : vector<8xf32> to vector<8x1xf32>
    %4 = vector.broadcast %3 : vector<8x1xf32> to vector<8x32xf32>
    %5 = arith.subf %0, %4 : vector<8x32xf32>
    %6 = math.exp %5 : vector<8x32xf32>
    %cst_3 = arith.constant dense<0.000000e+00> : vector<8xf32>
    %7 = vector.multi_reduction <add>, %6, %cst_3 [1] : vector<8x32xf32> to vector<8xf32>
    %8 = vector.shape_cast %7 : vector<8xf32> to vector<8x1xf32>
    %9 = tpu.iota {dimensions = array<i32: 1>} : vector<8x32xi32>
    %10 = vector.broadcast %1 : vector<8x1xi32> to vector<8x32xi32>
    %11 = arith.cmpi eq, %9, %10 : vector<8x32xi32>
    %cst_4 = arith.constant 0.000000e+00 : f32
    %12 = vector.broadcast %cst_4 : f32 to vector<8x32xf32>
    %13 = arith.select %11, %0, %12 : vector<8x32xi1>, vector<8x32xf32>
    %cst_5 = arith.constant dense<0.000000e+00> : vector<8xf32>
    %14 = vector.multi_reduction <add>, %13, %cst_5 [1] : vector<8x32xf32> to vector<8xf32>
    %15 = vector.shape_cast %14 : vector<8xf32> to vector<8x1xf32>
    %16 = math.log %8 : vector<8x1xf32>
    %17 = arith.addf %3, %16 : vector<8x1xf32>
    %18 = arith.subf %17, %15 : vector<8x1xf32>
    %c0_6 = arith.constant 0 : index
    %c0_7 = arith.constant 0 : index
    %19 = vector.load %arg3[%c0_6, %c0_7] : memref<8x1xf32, #tpu.memory_space<vmem>>, vector<8x1xf32>
    tpu.vector_store %arg3[%c0_6, %c0_7], %18 {strides = array<i32>} : memref<8x1xf32, #tpu.memory_space<vmem>>, vector<8x1xf32>,
    return
  }
  func.func @transform_0(%arg0: i32) -> (i32, i32) {
    %c0_i32 = arith.constant 0 : i32
    %c0_i32_0 = arith.constant 0 : i32
    return %arg0, %c0_i32 : i32, i32
  }
  func.func @transform_1(%arg0: i32) -> (i32, i32) {
    %c0_i32 = arith.constant 0 : i32
    %c0_i32_0 = arith.constant 0 : i32
    return %arg0, %c0_i32 : i32, i32
  }
  func.func @transform_2(%arg0: i32) -> (i32, i32) {
    %c0_i32 = arith.constant 0 : i32
    %c0_i32_0 = arith.constant 0 : i32
    return %arg0, %c0_i32 : i32, i32
  }
}

</mosaic_0001>

<llo_original>
// kernel: tpu_custom_call.1
$region0: #{tpu_custom_call.1}
  #allocation0 [shape = 'u32[]', space=smem, size = 0x4, offset = 0x4, fixed_abs, tag = 'smem constant byte address 0x4 - core index']
  #allocation1 [shape = 'u32[72,128]{1,0:T(1,128)}', space=vmem, size = 0x9000, scoped, tag = 'internal scratch']
  %s0 = inlined_call_operand.vmem [shape: f32[8,32], index: 0, kind: input, shape index: {}]
  %s1 = inlined_call_operand.vmem [shape: s32[8,1], index: 1, kind: input, shape index: {}]
  %s2 = inlined_call_operand.vmem [shape: f32[8,1], index: 2, kind: output, shape index: {}]
  %s3 = sld [smem:[#allocation0]]
  $region18: #{tpu_custom_call.1} parent=0
    _
  %s5 = ssub.s32 1, %s3
  %s6 = scalar_select 0, %s5, %s3
  // Predicated region
  $region2: #{tpu_custom_call.1} parent=0 // pred_check
    _
  $region3: #{tpu_custom_call.1} parent=0 // pred_check_branch
    %8 = sbr.rel (0) target = $region5
  $region4: #{tpu_custom_call.1} parent=0 // pred_region
    _
  $region5: #{tpu_custom_call.1} parent=0 // pred_fallthru
    _
  // Predicated region
  $region6: #{tpu_custom_call.1} parent=0 // pred_check
    _
  $region7: #{tpu_custom_call.1} parent=0 // pred_check_branch
    %10 = sbr.rel (0) target = $region9
  $region8: #{tpu_custom_call.1} parent=0 // pred_region
    _
  $region9: #{tpu_custom_call.1} parent=0 // pred_fallthru
    _
  %v11 = vld [vmem:[%s0] sm:$0xff]
  %v12 = vld [vmem:[%s1] sm:$0xff]
  %vm13 = vcmask 261120
  %v14 = vsel %vm13, %v11, -inf
  %15 = vmax.xlane.f32.xlu0 %v14
  %v16 = vpop.xlane.xlu0 %15
  %v17 = vsub.f32 %v11, %v16
  %v18 = vmul.f32 %v17, 1.442695
  %v19 = vpow.pop %v18
  %v20 = vsel %vm13, %v19, 0.0
  %21 = vadd.xlane.f32.xlu0 %v20
  %v22 = vpop.xlane.xlu0 %21
  %v23 = vlaneseq
  %v24 = vand.u32 %v23, 127
  %25 = vset.pattern.permute.xlu0 0
  %26 = vperm.xlu0 %25, %v12
  %v27 = vpop.permute.xlu0 %26
  %vm28 = vcmp.eq.s32.totalorder %v24, %v27
  %v29 = vsel %vm28, %v11, 0.0
  %v30 = vsel %vm13, %v29, 0.0
  %31 = vadd.xlane.f32.xlu0 %v30
  %v32 = vpop.xlane.xlu0 %31
  %v33 = vlog2.pop %v22
  %v34 = vmul.f32 %v33, 0.6931472
  %v35 = vadd.f32 %v16, %v34
  %v36 = vsub.f32 %v35, %v32
  %vm37 = vcmask 7168
  %38 = vst.msk [vmem:[%s2] sm:$0xff] %vm37, %v36
  // Predicated region
  $region10: #{tpu_custom_call.1} parent=0 // pred_check
    _
  $region11: #{tpu_custom_call.1} parent=0 // pred_check_branch
    %40 = sbr.rel (0) target = $region13
  $region12: #{tpu_custom_call.1} parent=0 // pred_region
    _
  $region13: #{tpu_custom_call.1} parent=0 // pred_fallthru
    _
  // Predicated region
  $region14: #{tpu_custom_call.1} parent=0 // pred_check
    _
  $region15: #{tpu_custom_call.1} parent=0 // pred_check_branch
    %42 = sbr.rel (0) target = $region17
  $region16: #{tpu_custom_call.1} parent=0 // pred_region
    _
  $region17: #{tpu_custom_call.1} parent=0 // pred_fallthru
    _

</llo_original>
